<compile_context>
chip_gen: v5e
topology: v5e:2x2
jax: 0.10.0
libtpu: 0.0.40
codegen_flags: <defaults>
</compile_context>

<pallas_src>
import jax
import jax.numpy as jnp
from jax.experimental import pallas as pl
from jax.experimental.pallas import tpu as pltpu


def _tpool_kernel(x_ref, w_ref, o_ref):
    # x_ref: (1, Cin, t_hw)  activation slab (channels x spatial-tile)
    # w_ref: (Cout, Cin)     full weight, resident across the grid
    # o_ref: (1, Cout, t_hw) lane-dense NCHW output slab
    o_ref[0] = jnp.dot(
        w_ref[...], x_ref[0], preferred_element_type=jnp.float32
    ).astype(o_ref.dtype)


def _pick_spatial_tile(hw, max_tile=8192):
    """Largest multiple-of-128 divisor of hw not exceeding max_tile.

    Falls back to the full spatial extent when hw is not 128-aligned
    (a full-extent last dim is always a legal block shape), which keeps the
    kernel pad-free in all cases.
    """
    if hw % 128 != 0:
        return hw
    best = 128
    t = 128
    limit = min(hw, max_tile)
    while t <= limit:
        if hw % t == 0:
            best = t
        t += 128
    return best


def tpool_forward(x, weight, stride):
    """Pallas implementation of TPool.forward.

    x:      (NT, C, H, W)  float32, NCHW (PyTorch convention)
    weight: (Cout, Cin, 1, 1) with Cin = stride * C, Cout = n_f
    returns (NT // stride, Cout, H, W)
    """
    NT, C, H, W = x.shape
    Cout, Cin, kh, kw = weight.shape
    assert kh == 1 and kw == 1
    assert Cin == stride * C
    assert NT % stride == 0
    B = NT // stride
    HW = H * W

    # Same memory regrouping as torch's x.reshape(-1, stride*C, H, W), plus a
    # flatten of the spatial dims.  Pure row-major reshapes: no data movement,
    # no transposes, no padding.
    x_r = x.reshape(B, Cin, HW)
    w_mat = weight.reshape(Cout, Cin)

    t_hw = _pick_spatial_tile(HW)
    grid = (B, HW // t_hw)

    itemsize = jnp.dtype(x.dtype).itemsize
    cost = pl.CostEstimate(
        flops=2 * B * HW * Cin * Cout,
        transcendentals=0,
        bytes_accessed=(B * Cin * HW + B * Cout * HW + Cout * Cin) * itemsize,
    )

    out = pl.pallas_call(
        _tpool_kernel,
        out_shape=jax.ShapeDtypeStruct((B, Cout, HW), x.dtype),
        grid_spec=pltpu.PrefetchScalarGridSpec(
            num_scalar_prefetch=0,
            grid=grid,
            in_specs=[
                pl.BlockSpec((1, Cin, t_hw), lambda b, j: (b, 0, j)),
                pl.BlockSpec((Cout, Cin), lambda b, j: (0, 0)),
            ],
            out_specs=pl.BlockSpec((1, Cout, t_hw), lambda b, j: (b, 0, j)),
        ),
        compiler_params=pltpu.CompilerParams(
            dimension_semantics=("parallel", "parallel"),
        ),
        cost_estimate=cost,
    )(x_r, w_mat)

    # Pure reshape back to NCHW (no data movement).
    return out.reshape(B, Cout, H, W)


if __name__ == "__main__":
    # Small shapes consistent with the module: n_f=8 channels, stride=2,
    # NT=4 frames (so batch after pooling = 2), 16x16 spatial.
    n_f, stride = 8, 2
    NT, C, H, W = 4, n_f, 16, 16

    key = jax.random.PRNGKey(0)
    kx, kw = jax.random.split(key)
    x = jax.random.normal(kx, (NT, C, H, W), dtype=jnp.float32)
    # Deterministic synthetic Conv2d(n_f*stride, n_f, 1, bias=False) weight.
    weight = jax.random.normal(kw, (n_f, n_f * stride, 1, 1), dtype=jnp.float32) * 0.1

    out = tpool_forward(x, weight, stride)
    out = jax.block_until_ready(out)

    # Pure-JAX reference of the same 1x1 conv for a sanity check.
    x_r = x.reshape(NT // stride, stride * C, H, W)
    ref = jnp.einsum("bchw,oc->bohw", x_r, weight.reshape(n_f, stride * C))
    assert out.shape == (NT // stride, n_f, H, W)
    assert jnp.allclose(out, ref, atol=1e-4, rtol=1e-4)

    print("KERNEL_OK")
</pallas_src>

<mosaic_0001>
module attributes {stable_mosaic.version = 11 : i64} {
  func.func @_tpool_kernel(%arg0: i32, %arg1: i32, %arg2: memref<1x16x256xf32, #tpu.memory_space<vmem>>, %arg3: memref<8x16xf32, #tpu.memory_space<vmem>>, %arg4: memref<1x8x256xf32, #tpu.memory_space<vmem>>) attributes {dimension_semantics = [#tpu.dimension_semantics<parallel>, #tpu.dimension_semantics<parallel>], iteration_bounds = array<i64: 2, 1>, scalar_prefetch = 0 : i64, scratch_operands = 0 : i64, tpu.core_type = #tpu.core_type<tc>, window_params = [{transform_indices = @transform_0, window_bounds = array<i64: 1, 16, 256>}, {pipeline_mode = #tpu.pipeline_mode<synchronous>, transform_indices = @transform_1, window_bounds = array<i64: 8, 16>}, {transform_indices = @transform_2, window_bounds = array<i64: 1, 8, 256>}]} {
    %c0 = arith.constant 0 : index
    %c0_0 = arith.constant 0 : index
    %0 = vector.load %arg3[%c0, %c0_0] : memref<8x16xf32, #tpu.memory_space<vmem>>, vector<8x16xf32>
    %c0_1 = arith.constant 0 : index
    %c0_2 = arith.constant 0 : index
    %c0_3 = arith.constant 0 : index
    %1 = vector.load %arg2[%c0_1, %c0_2, %c0_3] : memref<1x16x256xf32, #tpu.memory_space<vmem>>, vector<1x16x256xf32>
    %2 = vector.shape_cast %1 : vector<1x16x256xf32> to vector<16x256xf32>
    %cst = arith.constant dense<0.000000e+00> : vector<8x256xf32>
    %3 = tpu.matmul %0, %2, %cst {dimension_numbers = #tpu.dot_dimension_numbers<[1], [0], [0], [1], [0, 0, 1, 1], [], []>} : vector<8x16xf32>, vector<16x256xf32>, vector<8x256xf32> -> vector<8x256xf32>
    %c0_4 = arith.constant 0 : index
    %c0_5 = arith.constant 0 : index
    %c0_6 = arith.constant 0 : index
    %4 = vector.load %arg4[%c0_4, %c0_5, %c0_6] : memref<1x8x256xf32, #tpu.memory_space<vmem>>, vector<1x8x256xf32>
    %5 = vector.shape_cast %4 : vector<1x8x256xf32> to vector<8x256xf32>
    %6 = vector.shape_cast %3 : vector<8x256xf32> to vector<1x8x256xf32>
    tpu.vector_store %arg4[%c0_4, %c0_5, %c0_6], %6 {strides = array<i32>} : memref<1x8x256xf32, #tpu.memory_space<vmem>>, vector<1x8x256xf32>,
    return
  }
  func.func @transform_0(%arg0: i32, %arg1: i32) -> (i32, i32, i32) {
    %c0_i32 = arith.constant 0 : i32
    %c0_i32_0 = arith.constant 0 : i32
    return %arg0, %c0_i32, %arg1 : i32, i32, i32
  }
  func.func @transform_1(%arg0: i32, %arg1: i32) -> (i32, i32) {
    %c0_i32 = arith.constant 0 : i32
    %c0_i32_0 = arith.constant 0 : i32
    %c0_i32_1 = arith.constant 0 : i32
    return %c0_i32, %c0_i32_0 : i32, i32
  }
  func.func @transform_2(%arg0: i32, %arg1: i32) -> (i32, i32, i32) {
    %c0_i32 = arith.constant 0 : i32
    %c0_i32_0 = arith.constant 0 : i32
    return %arg0, %c0_i32, %arg1 : i32, i32, i32
  }
}

</mosaic_0001>

<llo_original>
// kernel: tpu_custom_call.1
$region0: #{tpu_custom_call.1}
  #allocation0 [shape = 'u32[]', space=smem, size = 0x4, offset = 0x4, fixed_abs, tag = 'smem constant byte address 0x4 - core index']
  #allocation1 [shape = 'u32[72,128]{1,0:T(1,128)}', space=vmem, size = 0x9000, scoped, tag = 'internal scratch']
  %s0 = inlined_call_operand.hbm [shape: f32[2,16,256], index: 0, kind: input, shape index: {}]
  %s1 = inlined_call_operand.hbm [shape: f32[8,16], index: 1, kind: input, shape index: {}]
  %s2 = inlined_call_operand.hbm [shape: f32[2,8,256], index: 2, kind: output, shape index: {}]
  %s3 = sld [smem:[#allocation0]]
  $region49: #{tpu_custom_call.1} parent=0
    _
  %s5 = ssub.s32 1, %s3
  %s6 = scalar_select 0, %s5, %s3
  $region1: #{tpu_custom_call.1} parent=0
    #allocation2 [shape = 'u8[32768]{0}', space=vmem, size = 0x8000, scoped, tag = 'input window, operand 0']
    #allocation3 [shape = 's32[2]{0}', space=sflag, size = 0x8, scoped, tag = 'scoped memory for tpu_custom_call.1']
    #allocation4 [shape = 's32[2]{0}', space=sflag, size = 0x8, scoped, tag = 'scoped memory for tpu_custom_call.1']
    #allocation5 [shape = 'u8[4096]{0}', space=vmem, size = 0x1000, scoped, tag = 'input window, operand 1, single buffered']
    #allocation6 [shape = 's32[1]{0}', space=sflag, size = 0x4, scoped, tag = 'scoped memory for tpu_custom_call.1']
    #allocation7 [shape = 'u8[16384]{0}', space=vmem, size = 0x4000, scoped, tag = 'output window, operand 0']
    %7 = vsyncpa [#allocation3], 0
    %s8 = scalar_lea.sflag [#allocation3], 1
    %9 = vsyncpa %s8, 0
    %10 = vsyncpa [#allocation6], 0
    %11 = vsyncpa [#allocation4], 0
    %s12 = scalar_lea.sflag [#allocation4], 1
    %13 = vsyncpa %s12, 0
    loop: start=0, step=1, limit=4
    $region2: #{tpu_custom_call.1} parent=1 // loop_pre_header
      _
    $region3: #{tpu_custom_call.1} parent=1 // loop_header
      %s15 = sphi 0, %s19
      %p16 = scmp.ge.s32.totalorder %s15, 4
      %s22 = sphi 0, %s34
      %s23 = sphi 0, %s30
      %s24 = sphi 0, %s22
      %s25 = sphi 0, %s23
      %s26 = sphi 0, %s24
      %s27 = sphi 0, %s25
      %s39 = sphi 0, %s41
      %s42 = sphi 0, %s39
      %s43 = sphi 0, %s42
      %s59 = sphi 0, %s43
      %s63 = sphi 0, %s63
      %s65 = sphi 0, %s63
      %s66 = sphi 0, %s65
      %s80 = sphi 0, %s66
      %s88 = sphi 0, %s90
      %s91 = sphi 0, %s88
      %s92 = sphi 0, %s91
      %s108 = sphi 0, %s92
    $region4: #{tpu_custom_call.1} parent=1 // loop_header_branch
      %18 = sbr.rel (%p16) target = $region8
    $region5: #{tpu_custom_call.1} parent=1 // loop_body
      %s20 = ssub.s32 %s15, 1
      %s21 = ssub.s32 %s15, 2
      %s28 = sadd.s32 1, %s23
      %p29 = scmp.ge.s32.totalorder %s28, 1
      %s30 = scalar_select %p29, 0, %s28
      %s31 = sadd.s32 1, %s22
      %s32 = scalar_select %p29, %s31, %s22
      %p33 = scmp.ge.s32.totalorder %s32, 2
      %s34 = scalar_select %p33, 0, %s32
      %s35 = ssub.s32 %s22, %s34
      %s36 = ssub.s32 %s23, %s30
      %s37 = sor.u32 %s35, %s36
      %p38 = scmp.eq.s32.totalorder %s37, 0
      %s40 = sadd.s32 %s39, 1
      %s41 = scalar_select %p38, %s39, %s40
      %p44 = pneg %p38
      %p45 = scmp.eq.s32.totalorder %s15, 1
      %p46 = por %p44, %p45
      %p47 = scmp.ne.s32.totalorder %s39, %s42
      %p48 = scmp.eq.s32.totalorder %s15, 0
      %p49 = por %p47, %p48
      %p50 = scmp.ne.s32.totalorder %s39, %s42
      %p51 = scmp.eq.s32.totalorder %s20, 1
      %p52 = por %p50, %p51
      %p53 = scmp.ne.s32.totalorder %s42, %s43
      %p54 = scmp.eq.s32.totalorder %s20, 0
      %p55 = por %p53, %p54
      %p56 = scmp.ne.s32.totalorder %s42, %s43
      %p57 = scmp.eq.s32.totalorder %s21, 1
      %p58 = por %p56, %p57
      %p60 = scmp.ne.s32.totalorder %s43, %s59
      %p61 = scmp.eq.s32.totalorder %s21, 0
      %p62 = por %p60, %p61
      %s64 = sadd.s32 %s63, 1
      %p67 = scmp.eq.s32.totalorder %s15, 1
      %p68 = scmp.ne.s32.totalorder %s63, %s65
      %p69 = scmp.eq.s32.totalorder %s15, 0
      %p70 = por %p68, %p69
      %p71 = scmp.ne.s32.totalorder %s63, %s65
      %p72 = scmp.eq.s32.totalorder %s20, 1
      %p73 = por %p71, %p72
      %p74 = scmp.ne.s32.totalorder %s65, %s66
      %p75 = scmp.eq.s32.totalorder %s20, 0
      %p76 = por %p74, %p75
      %p77 = scmp.ne.s32.totalorder %s65, %s66
      %p78 = scmp.eq.s32.totalorder %s21, 1
      %p79 = por %p77, %p78
      %p81 = scmp.ne.s32.totalorder %s66, %s80
      %p82 = scmp.eq.s32.totalorder %s21, 0
      %p83 = por %p81, %p82
      %s84 = ssub.s32 %s22, %s34
      %s85 = ssub.s32 %s23, %s30
      %s86 = sor.u32 %s84, %s85
      %p87 = scmp.eq.s32.totalorder %s86, 0
      %s89 = sadd.s32 %s88, 1
      %s90 = scalar_select %p87, %s88, %s89
      %p93 = pneg %p87
      %p94 = scmp.eq.s32.totalorder %s15, 1
      %p95 = por %p93, %p94
      %p96 = scmp.ne.s32.totalorder %s88, %s91
      %p97 = scmp.eq.s32.totalorder %s15, 0
      %p98 = por %p96, %p97
      %p99 = scmp.ne.s32.totalorder %s88, %s91
      %p100 = scmp.eq.s32.totalorder %s20, 1
      %p101 = por %p99, %p100
      %p102 = scmp.ne.s32.totalorder %s91, %s92
      %p103 = scmp.eq.s32.totalorder %s20, 0
      %p104 = por %p102, %p103
      %p105 = scmp.ne.s32.totalorder %s91, %s92
      %p106 = scmp.eq.s32.totalorder %s21, 1
      %p107 = por %p105, %p106
      %p109 = scmp.ne.s32.totalorder %s92, %s108
      %p110 = scmp.eq.s32.totalorder %s21, 0
      %p111 = por %p109, %p110
      %p112 = scmp.le.s32.totalorder 1, %s15
      %p113 = scmp.lt.s32.totalorder %s15, 3
      %p114 = pnand %p112, %p113
      %p115 = pneg %p114
      // Predicated region
      $region9: #{tpu_custom_call.1} parent=5 // pred_check
        _
      $region10: #{tpu_custom_call.1} parent=5 // pred_check_branch
        %117 = sbr.rel (%p114) target = $region12
      $region11: #{tpu_custom_call.1} parent=5 // pred_region
        %s118 = ssub.s32 %s15, 1
        // Predicated region
        $region13: #{tpu_custom_call.1} parent=11 // pred_check
          %p119 = pneg %p76
        $region14: #{tpu_custom_call.1} parent=11 // pred_check_branch
          %121 = sbr.rel (%p119) target = $region16
        $region15: #{tpu_custom_call.1} parent=11 // pred_region
          %123 = vsyncadd [#allocation6], 0
          %s125 = sshll.u32 %s1, 4
          %s126 = int_to_ptr.hbm [resolvable:$true] %s125
          %s127 = sshll.u32 [#allocation5], 4
          %s128 = int_to_ptr.vmem [resolvable:$true] %s127
          %130 = dma.hbm_to_vmem [thread:$0]  %s126, 128, %s128, [#allocation6]
        $region16: #{tpu_custom_call.1} parent=11 // pred_fallthru
          _
      $region12: #{tpu_custom_call.1} parent=5 // pred_fallthru
        _
      %p131 = scmp.lt.s32.totalorder %s15, 2
      // Predicated region
      $region17: #{tpu_custom_call.1} parent=5 // pred_check
        %p132 = pneg %p131
      $region18: #{tpu_custom_call.1} parent=5 // pred_check_branch
        %134 = sbr.rel (%p132) target = $region20
      $region19: #{tpu_custom_call.1} parent=5 // pred_region
        // Predicated region
        $region21: #{tpu_custom_call.1} parent=19 // pred_check
          %p135 = pneg %p49
        $region22: #{tpu_custom_call.1} parent=19 // pred_check_branch
          %137 = sbr.rel (%p135) target = $region24
        $region23: #{tpu_custom_call.1} parent=19 // pred_region
          %s138 = sand.u32 %s39, 1
          %s139 = scalar_lea.sflag [#allocation3], %s138
          %s140 = sand.u32 %s39, 1
          %s141 = smul.addr %s140, 32
          %s142 = scalar_lea.vmem [#allocation2], %s141
          %s143 = smul.u32 2, %s23
          %145 = vsyncadd %s139, 0
          %s146 = smul.addr %s22, 4
          %s147 = sadd.s32 %s143, %s146
          %s148 = smul.addr %s147, 8
          %s149 = scalar_lea.hbm %s0, %s148
          %s150 = sshll.u32 %s149, 4
          %s151 = int_to_ptr.hbm [resolvable:$true] %s150
          %s152 = sshll.u32 %s142, 4
          %s153 = int_to_ptr.vmem [resolvable:$true] %s152
          %158 = dma.hbm_to_vmem [thread:$0]  %s151, 512, %s153, %s139, 256, 256, 16
        $region24: #{tpu_custom_call.1} parent=19 // pred_fallthru
          _
      $region20: #{tpu_custom_call.1} parent=5 // pred_fallthru
        _
      %p159 = scmp.le.s32.totalorder 1, %s15
      %p160 = scmp.lt.s32.totalorder %s15, 3
      %p161 = pnand %p159, %p160
      %p162 = pneg %p161
      // Predicated region
      $region25: #{tpu_custom_call.1} parent=5 // pred_check
        _
      $region26: #{tpu_custom_call.1} parent=5 // pred_check_branch
        %164 = sbr.rel (%p161) target = $region28
      $region27: #{tpu_custom_call.1} parent=5 // pred_region
        %s165 = ssub.s32 %s15, 1
        %s166 = sand.u32 %s42, 1
        %s167 = scalar_lea.sflag [#allocation3], %s166
        %s168 = sand.u32 %s42, 1
        %s169 = smul.addr %s168, 32
        %s170 = scalar_lea.vmem [#allocation2], %s169
        // Predicated region
        $region29: #{tpu_custom_call.1} parent=27 // pred_check
          %p171 = pneg %p55
        $region30: #{tpu_custom_call.1} parent=27 // pred_check_branch
          %173 = sbr.rel (%p171) target = $region32
        $region31: #{tpu_custom_call.1} parent=27 // pred_region
          %175 = dma.done %s167, 512
        $region32: #{tpu_custom_call.1} parent=27 // pred_fallthru
          _
        // Predicated region
        $region33: #{tpu_custom_call.1} parent=27 // pred_check
          %p176 = pneg %p76
        $region34: #{tpu_custom_call.1} parent=27 // pred_check_branch
          %178 = sbr.rel (%p176) target = $region36
        $region35: #{tpu_custom_call.1} parent=27 // pred_region
          %180 = dma.done [#allocation6], 128
        $region36: #{tpu_custom_call.1} parent=27 // pred_fallthru
          _
        %s181 = sand.u32 %s42, 1
        %s182 = scalar_lea.sflag [#allocation3], %s181
        %s183 = sand.u32 %s42, 1
        %s184 = smul.addr %s183, 32
        %s185 = scalar_lea.vmem [#allocation2], %s184
        %p186 = pneg %p55
        %p187 = pneg %p52
        %p188 = pneg %p76
        %p189 = pneg %p73
        %p190 = pneg %p104
        %p191 = pneg %p101
        %s192 = sand.u32 %s91, 1
        %s193 = scalar_lea.sflag [#allocation4], %s192
        %s194 = sand.u32 %s91, 1
        %s195 = smul.addr %s194, 16
        %s196 = scalar_lea.vmem [#allocation7], %s195
        %s197 = smul.u32 2, %s25
        %s198 = smul.u32 2, %s25
        %v199 = vld [vmem:[#allocation5] sm:$0xff]
        %v200 = vld [vmem:[%s170] sm:$0xff]
        %v201 = vld [vmem:[%s170 + $0x8] sm:$0xff]
        %v202 = vld [vmem:[%s170 + $0x10] sm:$0xff]
        %v203 = vld [vmem:[%s170 + $0x18] sm:$0xff]
        %vm204 = vcmask 130048
        %v206 = vsel %vm204, %v199, 0
        %208 = vmatpush.msra.mxu0 0.0
        %209 = vmatpush.msra.mxu0 0.0
        %210 = vmatpush.msra.mxu0 0.0
        %211 = vmatpush.msra.mxu0 0.0
        %212 = vmatpush.msra.mxu0 0.0
        %213 = vmatpush.msra.mxu0 0.0
        %214 = vmatpush.msra.mxu0 0.0
        %215 = vmatpush.msra.mxu0 0.0
        %216 = vmatpush.msra.mxu0 0.0
        %217 = vmatpush.msra.mxu0 0.0
        %218 = vmatpush.msra.mxu0 0.0
        %219 = vmatpush.msra.mxu0 0.0
        %220 = vmatpush.msra.mxu0 0.0
        %221 = vmatpush.msra.mxu0 0.0
        %222 = vmatpush.msra.mxu0 %v202
        %223 = vmatpush.msra.mxu0 %v200
        %224 = vmatmul.f32.gmra.mxu0 %v206
        %v225 = vpop.f32.mrf.mxu0
        %v226 = vadd.f32 0.0, %v225
        %227 = vdwg.mxu0
        %228 = vmatpush.msra.mxu0 0.0
        %229 = vmatpush.msra.mxu0 0.0
        %230 = vmatpush.msra.mxu0 0.0
        %231 = vmatpush.msra.mxu0 0.0
        %232 = vmatpush.msra.mxu0 0.0
        %233 = vmatpush.msra.mxu0 0.0
        %234 = vmatpush.msra.mxu0 0.0
        %235 = vmatpush.msra.mxu0 0.0
        %236 = vmatpush.msra.mxu0 0.0
        %237 = vmatpush.msra.mxu0 0.0
        %238 = vmatpush.msra.mxu0 0.0
        %239 = vmatpush.msra.mxu0 0.0
        %240 = vmatpush.msra.mxu0 0.0
        %241 = vmatpush.msra.mxu0 0.0
        %242 = vmatpush.msra.mxu0 %v203
        %243 = vmatpush.msra.mxu0 %v201
        %244 = vmatmul.f32.gmra.mxu0 %v206
        %v245 = vpop.f32.mrf.mxu0
        %v246 = vadd.f32 0.0, %v245
        %247 = vdwg.mxu0
        %248 = vst [vmem:[%s196] sm:$0xff] %v226
        %249 = vst [vmem:[%s196 + $0x8] sm:$0xff] %v246
        %s250 = sand.u32 %s91, 1
        %s251 = scalar_lea.sflag [#allocation4], %s250
        %s252 = sand.u32 %s91, 1
        %s253 = smul.addr %s252, 16
        %s254 = scalar_lea.vmem [#allocation7], %s253
        // Predicated region
        $region37: #{tpu_custom_call.1} parent=27 // pred_check
          %p255 = pneg %p101
        $region38: #{tpu_custom_call.1} parent=27 // pred_check_branch
          %257 = sbr.rel (%p255) target = $region40
        $region39: #{tpu_custom_call.1} parent=27 // pred_region
          %s258 = smul.u32 2, %s25
          %260 = vsyncadd %s251, 0
          %s261 = smul.addr %s24, 2
          %s262 = sadd.s32 %s258, %s261
          %s263 = smul.addr %s262, 8
          %s264 = scalar_lea.hbm %s2, %s263
          %s266 = sshll.u32 %s254, 4
          %s267 = int_to_ptr.vmem [resolvable:$true] %s266
          %s268 = sshll.u32 %s264, 4
          %s269 = int_to_ptr.hbm [resolvable:$true] %s268
          %271 = dma.vmem_to_hbm [thread:$0]  %s267, 256, %s269, %s251
        $region40: #{tpu_custom_call.1} parent=27 // pred_fallthru
          _
      $region28: #{tpu_custom_call.1} parent=5 // pred_fallthru
        _
      %p272 = scmp.le.s32.totalorder 2, %s15
      // Predicated region
      $region41: #{tpu_custom_call.1} parent=5 // pred_check
        %p273 = pneg %p272
      $region42: #{tpu_custom_call.1} parent=5 // pred_check_branch
        %275 = sbr.rel (%p273) target = $region44
      $region43: #{tpu_custom_call.1} parent=5 // pred_region
        %s276 = ssub.s32 %s15, 2
        // Predicated region
        $region45: #{tpu_custom_call.1} parent=43 // pred_check
          %p277 = pneg %p107
        $region46: #{tpu_custom_call.1} parent=43 // pred_check_branch
          %279 = sbr.rel (%p277) target = $region48
        $region47: #{tpu_custom_call.1} parent=43 // pred_region
          %s280 = sand.u32 %s92, 1
          %s281 = scalar_lea.sflag [#allocation4], %s280
          %s282 = sand.u32 %s92, 1
          %s283 = smul.addr %s282, 16
          %s284 = scalar_lea.vmem [#allocation7], %s283
          %286 = dma.done %s281, 256
        $region48: #{tpu_custom_call.1} parent=43 // pred_fallthru
          _
      $region44: #{tpu_custom_call.1} parent=5 // pred_fallthru
        _
    $region6: #{tpu_custom_call.1} parent=1 // loop_footer
      %s19 = sadd.s32 1, %s15
    $region7: #{tpu_custom_call.1} parent=1 // loop_footer_branch
      %14 = sbr.rel target = $region3
    $region8: #{tpu_custom_call.1} parent=1 // loop_exit
      _
    %287 = vsyncpa [#allocation3], 1
    %s288 = scalar_lea.sflag [#allocation3], 1
    %289 = vsyncpa %s288, 1
    %290 = vsyncpa [#allocation6], 1
    %291 = vsyncpa [#allocation4], 1
    %s292 = scalar_lea.sflag [#allocation4], 1
    %293 = vsyncpa %s292, 1

</llo_original>
